<compile_context>
chip_gen: v7x
topology: tpu7x:2x2x1
jax: 0.10.0
libtpu: 0.0.40
codegen_flags: <defaults>
</compile_context>

<pallas_src>
import functools

import jax
import jax.numpy as jnp
from jax.experimental import pallas as pl
from jax.experimental.pallas import tpu as pltpu


def _fusion_kernel(*refs, n_fused, acc_dtype):
    # refs = (w_ref[SMEM, (K+1,)], x_ref[(tm, L)], feat_0 ... feat_{K-1}, o_ref)
    w_ref = refs[0]
    x_ref = refs[1]
    feat_refs = refs[2:2 + n_fused]
    o_ref = refs[2 + n_fused]

    # Hoist the K+1 scalar weights once (single SMEM load + broadcast each).
    w = [w_ref[i].astype(acc_dtype) for i in range(n_fused + 1)]

    acc = x_ref[...].astype(acc_dtype) * w[0]
    for i in range(n_fused):              # K is small & static -> fully unrolled
        acc = acc + feat_refs[i][...].astype(acc_dtype) * w[i + 1]
    o_ref[...] = acc.astype(o_ref.dtype)


def _pick_row_tile(M, L, n_operands, itemsize, vmem_budget_bytes=20 * 1024 * 1024):
    """Largest row tile whose double-buffered (K+2)-operand footprint fits VMEM."""
    if M <= 8:
        return M                                    # single full-extent block
    max_block_elems = max(1, vmem_budget_bytes // (2 * n_operands * itemsize))
    tm = max(8, (max_block_elems // max(L, 1) // 8) * 8)   # sublane-aligned
    # Keep the grid length >= 2 so v7x can shard the grid across its 2 TCs.
    half_rows = (((M + 1) // 2 + 7) // 8) * 8
    tm = min(tm, max(8, half_rows))
    return min(tm, M)


def weighted_feature_fusion(x, skip_feats, w_param=None, *, use_weight=True):
    """Pallas TPU implementation of WeightedFeatureFusion.forward.

    x:          (N, C, H, W)
    skip_feats: list of K arrays, each (N, C, H, W)  (= outputs[layers[i]])
    w_param:    (K + 1,) raw nn.Parameter (only used when use_weight=True)
    """
    K = len(skip_feats)
    n = K + 1
    N, C, H, W = x.shape
    M, L = N * C, H * W

    # Tiny parameter transform stays in plain XLA: sigmoid(w) * 2/n.
    if use_weight:
        w_eff = jax.nn.sigmoid(w_param.astype(jnp.float32)) * (2.0 / n)
    else:
        w_eff = jnp.ones((n,), jnp.float32)      # unweighted fusion == plain sum

    x2d = x.reshape(M, L)
    feats2d = [f.reshape(M, L) for f in skip_feats]   # no jnp.stack: no extra HBM pass

    itemsize = jnp.dtype(x.dtype).itemsize
    tm = _pick_row_tile(M, L, n_operands=K + 2, itemsize=itemsize)
    grid = (pl.cdiv(M, tm),)                     # tail tile handled by Pallas masking

    acc_dtype = jnp.bfloat16 if x.dtype == jnp.bfloat16 else jnp.float32
    kernel = functools.partial(_fusion_kernel, n_fused=K, acc_dtype=acc_dtype)

    tile_spec = pl.BlockSpec((tm, L), lambda i: (i, 0))
    cost = pl.CostEstimate(
        flops=(2 * K + 1) * M * L,
        transcendentals=0,
        bytes_accessed=(K + 2) * M * L * itemsize,
    )

    out2d = pl.pallas_call(
        kernel,
        out_shape=jax.ShapeDtypeStruct((M, L), x.dtype),
        grid_spec=pltpu.PrefetchScalarGridSpec(
            num_scalar_prefetch=0,
            grid=grid,
            in_specs=[pl.BlockSpec(memory_space=pltpu.SMEM)]      # effective weights
                     + [tile_spec] * (K + 1),                     # x + K skip maps
            out_specs=tile_spec,
        ),
        compiler_params=pltpu.CompilerParams(
            dimension_semantics=("parallel",),
            vmem_limit_bytes=32 * 1024 * 1024,   # raise past v5e's 16 MiB default
        ),
        cost_estimate=cost,
        # NOTE: input_output_aliases={1: 0} could reuse x's HBM buffer for the
        # output (memory-only win); left off to keep the demo's `x` untouched.
    )(w_eff, x2d, *feats2d)

    return out2d.reshape(N, C, H, W)


def _reference(x, skip_feats, w_param, use_weight=True):
    n = len(skip_feats) + 1
    if use_weight:
        w = jax.nn.sigmoid(w_param.astype(jnp.float32)) * (2.0 / n)
        out = x.astype(jnp.float32) * w[0]
        for i, f in enumerate(skip_feats):
            out = out + f.astype(jnp.float32) * w[i + 1]
    else:
        out = x.astype(jnp.float32)
        for f in skip_feats:
            out = out + f.astype(jnp.float32)
    return out.astype(x.dtype)


if __name__ == "__main__":
    key = jax.random.PRNGKey(0)
    N, C, H, W = 2, 4, 16, 16
    layers = [-2, -3]            # two skip connections -> n = 3
    n = len(layers) + 1

    kx, k1, k2, kw = jax.random.split(key, 4)
    x = jax.random.normal(kx, (N, C, H, W), jnp.float32)
    outputs = {
        -2: jax.random.normal(k1, (N, C, H, W), jnp.float32),
        -3: jax.random.normal(k2, (N, C, H, W), jnp.float32),
    }
    skip_feats = [outputs[l] for l in layers]
    # Non-zero weights to exercise per-term scaling (deterministic from PRNGKey(0)).
    w_param = 0.5 * jax.random.normal(kw, (n,), jnp.float32)

    # weighted path
    out_w = weighted_feature_fusion(x, skip_feats, w_param, use_weight=True)
    out_w = jax.block_until_ready(out_w)
    ref_w = _reference(x, skip_feats, w_param, use_weight=True)
    assert out_w.shape == x.shape and out_w.dtype == x.dtype
    assert jnp.allclose(out_w, ref_w, atol=1e-5, rtol=1e-5), "weighted mismatch"

    # unweighted path (weight=False in the PyTorch module)
    out_u = weighted_feature_fusion(x, skip_feats, None, use_weight=False)
    out_u = jax.block_until_ready(out_u)
    ref_u = _reference(x, skip_feats, None, use_weight=False)
    assert jnp.allclose(out_u, ref_u, atol=1e-5, rtol=1e-5), "unweighted mismatch"

    print("KERNEL_OK")
</pallas_src>

<mosaic_0001>
module attributes {stable_mosaic.version = 11 : i64} {
  func.func @_fusion_kernel(%arg0: i32, %arg1: memref<3xf32, #tpu.memory_space<smem>>, %arg2: memref<8x256xf32, #tpu.memory_space<vmem>>, %arg3: memref<8x256xf32, #tpu.memory_space<vmem>>, %arg4: memref<8x256xf32, #tpu.memory_space<vmem>>, %arg5: memref<8x256xf32, #tpu.memory_space<vmem>>) attributes {dimension_semantics = [#tpu.dimension_semantics<parallel>], iteration_bounds = array<i64: 1>, scalar_prefetch = 0 : i64, scratch_operands = 0 : i64, tpu.core_type = #tpu.core_type<tc>, window_params = [{transform_indices = @transform_0, window_bounds = array<i64: 3>}, {transform_indices = @transform_1, window_bounds = array<i64: 8, 256>}, {transform_indices = @transform_2, window_bounds = array<i64: 8, 256>}, {transform_indices = @transform_3, window_bounds = array<i64: 8, 256>}, {transform_indices = @transform_4, window_bounds = array<i64: 8, 256>}]} {
    %c0 = arith.constant 0 : index
    %0 = memref.load %arg1[%c0] : memref<3xf32, #tpu.memory_space<smem>>
    %c1 = arith.constant 1 : index
    %1 = memref.load %arg1[%c1] : memref<3xf32, #tpu.memory_space<smem>>
    %c2 = arith.constant 2 : index
    %2 = memref.load %arg1[%c2] : memref<3xf32, #tpu.memory_space<smem>>
    %c0_0 = arith.constant 0 : index
    %c0_1 = arith.constant 0 : index
    %3 = vector.load %arg2[%c0_0, %c0_1] : memref<8x256xf32, #tpu.memory_space<vmem>>, vector<8x256xf32>
    %4 = vector.broadcast %0 : f32 to vector<8x256xf32>
    %5 = arith.mulf %3, %4 : vector<8x256xf32>
    %c0_2 = arith.constant 0 : index
    %c0_3 = arith.constant 0 : index
    %6 = vector.load %arg3[%c0_2, %c0_3] : memref<8x256xf32, #tpu.memory_space<vmem>>, vector<8x256xf32>
    %7 = vector.broadcast %1 : f32 to vector<8x256xf32>
    %8 = arith.mulf %6, %7 : vector<8x256xf32>
    %9 = arith.addf %5, %8 : vector<8x256xf32>
    %c0_4 = arith.constant 0 : index
    %c0_5 = arith.constant 0 : index
    %10 = vector.load %arg4[%c0_4, %c0_5] : memref<8x256xf32, #tpu.memory_space<vmem>>, vector<8x256xf32>
    %11 = vector.broadcast %2 : f32 to vector<8x256xf32>
    %12 = arith.mulf %10, %11 : vector<8x256xf32>
    %13 = arith.addf %9, %12 : vector<8x256xf32>
    %c0_6 = arith.constant 0 : index
    %c0_7 = arith.constant 0 : index
    %14 = vector.load %arg5[%c0_6, %c0_7] : memref<8x256xf32, #tpu.memory_space<vmem>>, vector<8x256xf32>
    tpu.vector_store %arg5[%c0_6, %c0_7], %13 {strides = array<i32>} : memref<8x256xf32, #tpu.memory_space<vmem>>, vector<8x256xf32>,
    return
  }
  func.func @transform_0(%arg0: i32) -> i32 {
    %c0_i32 = arith.constant 0 : i32
    %c0_i32_0 = arith.constant 0 : i32
    return %c0_i32 : i32
  }
  func.func @transform_1(%arg0: i32) -> (i32, i32) {
    %c0_i32 = arith.constant 0 : i32
    %c0_i32_0 = arith.constant 0 : i32
    return %arg0, %c0_i32 : i32, i32
  }
  func.func @transform_2(%arg0: i32) -> (i32, i32) {
    %c0_i32 = arith.constant 0 : i32
    %c0_i32_0 = arith.constant 0 : i32
    return %arg0, %c0_i32 : i32, i32
  }
  func.func @transform_3(%arg0: i32) -> (i32, i32) {
    %c0_i32 = arith.constant 0 : i32
    %c0_i32_0 = arith.constant 0 : i32
    return %arg0, %c0_i32 : i32, i32
  }
  func.func @transform_4(%arg0: i32) -> (i32, i32) {
    %c0_i32 = arith.constant 0 : i32
    %c0_i32_0 = arith.constant 0 : i32
    return %arg0, %c0_i32 : i32, i32
  }
}

</mosaic_0001>

<llo_original>
// kernel: tpu_custom_call.1
$region0: #{tpu_custom_call.1}
  #allocation0 [shape = 'u32[]', space=smem, size = 0x4, offset = 0x4, fixed_abs, tag = 'smem constant byte address 0x4 - core index']
  #allocation1 [shape = 'u32[144,128]{1,0:T(1,128)}', space=vmem, size = 0x12000, scoped, tag = 'internal scratch']
  %s0 = inlined_call_operand.hbm [shape: f32[3], index: 0, kind: input, shape index: {}]
  %s1 = inlined_call_operand.hbm [shape: f32[8,256], index: 1, kind: input, shape index: {}]
  %s2 = inlined_call_operand.hbm [shape: f32[8,256], index: 2, kind: input, shape index: {}]
  %s3 = inlined_call_operand.hbm [shape: f32[8,256], index: 3, kind: input, shape index: {}]
  %s4 = inlined_call_operand.hbm [shape: f32[8,256], index: 4, kind: output, shape index: {}]
  %s5 = sld [smem:[#allocation0]]
  $region42: #{tpu_custom_call.1} parent=0
    _
  %s7 = ssub.s32 1, %s5
  %s8 = scalar_select 0, %s7, %s5
  $region1: #{tpu_custom_call.1} parent=0
    #allocation2 [shape = 'u8[512]{0}', space=smem, size = 0x200, scoped, tag = 'input window, operand 0, single buffered']
    #allocation3 [shape = 's32[1]{0}', space=sflag, size = 0x4, scoped, tag = 'scoped memory for tpu_custom_call.1']
    #allocation4 [shape = 's32[1]{0}', space=sflag, size = 0x4, scoped, tag = 'scoped memory for tpu_custom_call.1']
    #allocation5 [shape = 's32[1]{0}', space=sflag, size = 0x4, scoped, tag = 'scoped memory for tpu_custom_call.1']
    #allocation6 [shape = 'u8[8192]{0}', space=vmem, size = 0x2000, scoped, tag = 'input window, operand 1, single buffered']
    #allocation7 [shape = 'u8[8192]{0}', space=vmem, size = 0x2000, scoped, tag = 'input window, operand 2, single buffered']
    #allocation8 [shape = 's32[1]{0}', space=sflag, size = 0x4, scoped, tag = 'scoped memory for tpu_custom_call.1']
    #allocation9 [shape = 'u8[8192]{0}', space=vmem, size = 0x2000, scoped, tag = 'input window, operand 3, single buffered']
    #allocation10 [shape = 'u8[8192]{0}', space=vmem, size = 0x2000, scoped, tag = 'output window, operand 0, single buffered']
    %9 = vsyncpa [#allocation5], 0
    %10 = vsyncpa [#allocation3], 0
    %11 = vsyncpa [#allocation8], 0
    %12 = vsyncpa [#allocation4], 0
    // Predicated region
    $region2: #{tpu_custom_call.1} parent=1 // pred_check
      _
    $region3: #{tpu_custom_call.1} parent=1 // pred_check_branch
      %14 = sbr.rel (0) target = $region5
    $region4: #{tpu_custom_call.1} parent=1 // pred_region
      %s16 = ssub.s32 16, 16
      %17 = vsyncadd [#allocation5], %s16
      %20 = dma.hbm_to_smem %s0, 16, [#allocation2], [#allocation5]
    $region5: #{tpu_custom_call.1} parent=1 // pred_fallthru
      _
    // Predicated region
    $region6: #{tpu_custom_call.1} parent=1 // pred_check
      _
    $region7: #{tpu_custom_call.1} parent=1 // pred_check_branch
      %22 = sbr.rel (0) target = $region9
    $region8: #{tpu_custom_call.1} parent=1 // pred_region
      %s24 = ssub.s32 256, 256
      %25 = vsyncadd [#allocation3], %s24
      %s27 = sshll.u32 [#allocation6], 4
      %s28 = int_to_ptr.vmem [resolvable:$true] %s27
      %30 = dma.hbm_to_vmem [thread:$0]  %s1, 256, %s28, [#allocation3]
    $region9: #{tpu_custom_call.1} parent=1 // pred_fallthru
      _
    // Predicated region
    $region10: #{tpu_custom_call.1} parent=1 // pred_check
      _
    $region11: #{tpu_custom_call.1} parent=1 // pred_check_branch
      %32 = sbr.rel (0) target = $region13
    $region12: #{tpu_custom_call.1} parent=1 // pred_region
      %s34 = ssub.s32 256, 256
      %35 = vsyncadd [#allocation8], %s34
      %s37 = sshll.u32 [#allocation7], 4
      %s38 = int_to_ptr.vmem [resolvable:$true] %s37
      %40 = dma.hbm_to_vmem [thread:$0]  %s2, 256, %s38, [#allocation8]
    $region13: #{tpu_custom_call.1} parent=1 // pred_fallthru
      _
    // Predicated region
    $region14: #{tpu_custom_call.1} parent=1 // pred_check
      _
    $region15: #{tpu_custom_call.1} parent=1 // pred_check_branch
      %42 = sbr.rel (0) target = $region17
    $region16: #{tpu_custom_call.1} parent=1 // pred_region
      %s44 = ssub.s32 256, 256
      %45 = vsyncadd [#allocation8], %s44
      %s47 = sshll.u32 [#allocation9], 4
      %s48 = int_to_ptr.vmem [resolvable:$true] %s47
      %50 = dma.hbm_to_vmem [thread:$0]  %s3, 256, %s48, [#allocation8]
    $region17: #{tpu_custom_call.1} parent=1 // pred_fallthru
      _
    // Predicated region
    $region18: #{tpu_custom_call.1} parent=1 // pred_check
      _
    $region19: #{tpu_custom_call.1} parent=1 // pred_check_branch
      %52 = sbr.rel (0) target = $region21
    $region20: #{tpu_custom_call.1} parent=1 // pred_region
      %53 = dma.done [#allocation5], 16
    $region21: #{tpu_custom_call.1} parent=1 // pred_fallthru
      _
    // Predicated region
    $region22: #{tpu_custom_call.1} parent=1 // pred_check
      _
    $region23: #{tpu_custom_call.1} parent=1 // pred_check_branch
      %55 = sbr.rel (0) target = $region25
    $region24: #{tpu_custom_call.1} parent=1 // pred_region
      %56 = dma.done [#allocation3], 256
    $region25: #{tpu_custom_call.1} parent=1 // pred_fallthru
      _
    // Predicated region
    $region26: #{tpu_custom_call.1} parent=1 // pred_check
      _
    $region27: #{tpu_custom_call.1} parent=1 // pred_check_branch
      %58 = sbr.rel (0) target = $region29
    $region28: #{tpu_custom_call.1} parent=1 // pred_region
      %59 = dma.done [#allocation8], 256
    $region29: #{tpu_custom_call.1} parent=1 // pred_fallthru
      _
    // Predicated region
    $region30: #{tpu_custom_call.1} parent=1 // pred_check
      _
    $region31: #{tpu_custom_call.1} parent=1 // pred_check_branch
      %61 = sbr.rel (0) target = $region33
    $region32: #{tpu_custom_call.1} parent=1 // pred_region
      %62 = dma.done [#allocation8], 256
    $region33: #{tpu_custom_call.1} parent=1 // pred_fallthru
      _
    %63 = sfence
    %s64 = sld [smem:[#allocation2]]
    %s65 = sld [smem:[#allocation2 + $0x1]]
    %s66 = sld [smem:[#allocation2 + $0x2]]
    %v67 = vld [vmem:[#allocation6] sm:$0xff]
    %v68 = vld [vmem:[#allocation6 + $0x8] sm:$0xff]
    %v69 = vstv %s64
    %v70 = vmul.f32 %v67, %v69
    %v71 = vmul.f32 %v68, %v69
    %v72 = vld [vmem:[#allocation7] sm:$0xff]
    %v73 = vld [vmem:[#allocation7 + $0x8] sm:$0xff]
    %v74 = vstv %s65
    %v75 = vmul.f32 %v72, %v74
    %v76 = vmul.f32 %v73, %v74
    %v77 = vadd.f32 %v70, %v75
    %v78 = vadd.f32 %v71, %v76
    %v79 = vld [vmem:[#allocation9] sm:$0xff]
    %v80 = vld [vmem:[#allocation9 + $0x8] sm:$0xff]
    %v81 = vstv %s66
    %v82 = vmul.f32 %v79, %v81
    %v83 = vmul.f32 %v80, %v81
    %v84 = vadd.f32 %v77, %v82
    %v85 = vadd.f32 %v78, %v83
    %86 = vst [vmem:[#allocation10] sm:$0xff] %v84
    %87 = vst [vmem:[#allocation10 + $0x8] sm:$0xff] %v85
    // Predicated region
    $region34: #{tpu_custom_call.1} parent=1 // pred_check
      _
    $region35: #{tpu_custom_call.1} parent=1 // pred_check_branch
      %89 = sbr.rel (0) target = $region37
    $region36: #{tpu_custom_call.1} parent=1 // pred_region
      %s91 = ssub.s32 256, 256
      %92 = vsyncadd [#allocation4], %s91
      %s94 = sshll.u32 [#allocation10], 4
      %s95 = int_to_ptr.vmem [resolvable:$true] %s94
      %97 = dma.vmem_to_hbm [thread:$0]  %s95, 256, %s4, [#allocation4]
    $region37: #{tpu_custom_call.1} parent=1 // pred_fallthru
      _
    // Predicated region
    $region38: #{tpu_custom_call.1} parent=1 // pred_check
      _
    $region39: #{tpu_custom_call.1} parent=1 // pred_check_branch
      %99 = sbr.rel (0) target = $region41
    $region40: #{tpu_custom_call.1} parent=1 // pred_region
      %100 = dma.done [#allocation4], 256
    $region41: #{tpu_custom_call.1} parent=1 // pred_fallthru
      _
    %101 = vsyncpa [#allocation3], 1
    %102 = vsyncpa [#allocation8], 1
    %103 = vsyncpa [#allocation4], 1
    %104 = vsyncpa [#allocation5], 1

</llo_original>
